<compile_context>
chip_gen: v5e
topology: v5e:2x2
jax: 0.10.0
libtpu: 0.0.40
codegen_flags: <defaults>
</compile_context>

<pallas_src>
import jax
import jax.numpy as jnp
from jax.experimental import pallas as pl
from jax.experimental.pallas import tpu as pltpu

LANES = 128                  # vreg lane width: keep the last dim lane-dense
MAX_TILE_ROWS = 8192         # (8192, 128) f32 = 4 MiB per buffer
MIN_TILE_ROWS = 1024         # don't shrink below ~512 KiB f32 per buffer


def mlp_skip_kernel(params_ref, x_ref, y_ref):
    # params_ref lives in SMEM: [w0, b0, w1, b1, w2, w_skip, b2 + b_skip]
    w0 = params_ref[0]
    b0 = params_ref[1]
    w1 = params_ref[2]
    b1 = params_ref[3]
    w2 = params_ref[4]
    w_skip = params_ref[5]
    b_out = params_ref[6]                     # fc2 bias + skip bias, pre-folded

    # Upcast in-register: free vs. the DMA, and safe on v5e (no bf16 VPU ops).
    x = x_ref[...].astype(jnp.float32)        # (tile_r, 128), lane-dense
    g0 = jnp.maximum(x * w0 + b0, 0.0)        # fc0 + ReLU
    g1 = jnp.maximum(g0 * w1 + b1, 0.0)       # fc1 + ReLU
    # fc2 + skip, single whole-tile (unmasked) store in the native dtype.
    y_ref[...] = (g1 * w2 + g0 * w_skip + b_out).astype(y_ref.dtype)


def _round_up(v, m):
    return ((v + m - 1) // m) * m


def _choose_tile_rows(rows, sublane):
    # Aim for >= ~8 grid steps on large inputs (so v7x's 2 TCs both get work),
    # but never drop below MIN_TILE_ROWS (per-step fixed cost ~0.35 us) and
    # never exceed MAX_TILE_ROWS (4 MiB f32 per buffer is plenty).
    target = _round_up(max(rows // 8, 1), sublane)
    tile = max(MIN_TILE_ROWS, target)
    tile = min(tile, MAX_TILE_ROWS)
    tile = min(tile, rows)                    # never larger than the array
    return _round_up(max(tile, sublane), sublane)


def mlp_forward(x, params):
    """x: any shape/float dtype (the op is elementwise; the module uses (N, 1));
    params: f32[8] = [w0, b0, w1, b1, w2, b2, w_skip, b_skip]."""
    orig_shape = x.shape
    orig_dtype = x.dtype
    n = int(x.size)
    if n == 0:
        return x

    # Stream in the native dtype when it is a supported float type; otherwise
    # fall back to f32 (doubles traffic only for exotic dtypes).
    if x.dtype in (jnp.dtype(jnp.float32), jnp.dtype(jnp.bfloat16)):
        compute_dtype = x.dtype
    else:
        compute_dtype = jnp.dtype(jnp.float32)
    sublane = 16 if compute_dtype == jnp.dtype(jnp.bfloat16) else 8

    # Fold the two output-path biases into one scalar (one fewer VPU add/elem).
    w0, b0, w1, b1, w2, b2, w_skip, b_skip = (params[i] for i in range(8))
    kparams = jnp.stack([w0, b0, w1, b1, w2, w_skip, b2 + b_skip]).astype(jnp.float32)

    # Lane-dense layout: view the flat N elements as (rows, 128).
    rows = _round_up(pl.cdiv(n, LANES), sublane)
    total = rows * LANES
    tile_r = _choose_tile_rows(rows, sublane)
    grid = pl.cdiv(rows, tile_r)              # ragged last block masked by Pallas

    x_flat = jnp.ravel(x).astype(compute_dtype)
    padded = total != n
    if padded:
        # Only pad to (sublane, 128) granularity; skipped entirely when N is
        # already a multiple of the tile granule (the common large-N case).
        x_flat = jnp.pad(x_flat, (0, total - n))
    x2d = x_flat.reshape(rows, LANES)         # contiguous reshape: no copy

    y2d = pl.pallas_call(
        mlp_skip_kernel,
        out_shape=jax.ShapeDtypeStruct((rows, LANES), compute_dtype),
        grid_spec=pl.GridSpec(
            grid=(grid,),
            in_specs=[
                pl.BlockSpec(memory_space=pltpu.MemorySpace.SMEM),    # 7 scalars
                pl.BlockSpec((tile_r, LANES), lambda i: (i, 0)),      # x tile
            ],
            out_specs=pl.BlockSpec((tile_r, LANES), lambda i: (i, 0)),
        ),
        compiler_params=pltpu.CompilerParams(
            dimension_semantics=("parallel",),     # shard rows across v7x's 2 TCs
            vmem_limit_bytes=48 * 1024 * 1024,     # headroom; under v7x 64 MiB VMEM
        ),
    )(kparams, x2d)

    if padded:
        # Padded tail elements run through the kernel and produce nonzero
        # values (relu(b0)*w1 + ... chain); the slice below removes them.
        y = y2d.reshape(-1)[:n].reshape(orig_shape)
    else:
        y = y2d.reshape(orig_shape)
    return y.astype(orig_dtype)


def mlp_reference(x, params):
    w0, b0, w1, b1, w2, b2, w_skip, b_skip = (params[i] for i in range(8))
    xf = x.astype(jnp.float32)
    z0 = xf * w0 + b0
    g0 = jnp.maximum(z0, 0.0)
    z1 = g0 * w1 + b1
    g1 = jnp.maximum(z1, 0.0)
    return ((g1 * w2 + b2) + (g0 * w_skip + b_skip)).astype(x.dtype)


if __name__ == "__main__":
    # Deterministic parameters matching the module's __init__ values:
    # [w0, b0, w1, b1, w2, b2, w_skip, b_skip]
    params = jnp.array([0.5, 0.0, 0.5, 1.0, 0.5, 2.0, 0.5, 0.0], dtype=jnp.float32)

    key = jax.random.PRNGKey(0)

    # Case 1: small (8, 1) f32 input, matching nn.Linear(1, 1) usage
    #         (exercises the padded-tail path).
    x_small = jax.random.normal(key, (8, 1), dtype=jnp.float32)
    y_small = jax.block_until_ready(mlp_forward(x_small, params))
    assert y_small.shape == (8, 1)
    assert jnp.allclose(y_small, mlp_reference(x_small, params), atol=1e-6, rtol=1e-6)

    # Case 2: (2048, 1) f32 input, a multiple of the 1024-element granule
    #         (exercises the zero-copy, no-pad path).
    x_big = jax.random.normal(key, (2048, 1), dtype=jnp.float32)
    y_big = jax.block_until_ready(mlp_forward(x_big, params))
    assert jnp.allclose(y_big, mlp_reference(x_big, params), atol=1e-6, rtol=1e-6)

    # Case 3: bf16 input stays bf16 in HBM (half the traffic), f32 compute in-reg.
    x_bf16 = jax.random.normal(key, (4096, 1), dtype=jnp.float32).astype(jnp.bfloat16)
    y_bf16 = jax.block_until_ready(mlp_forward(x_bf16, params))
    assert jnp.allclose(y_bf16.astype(jnp.float32),
                        mlp_reference(x_bf16, params).astype(jnp.float32),
                        atol=2e-2, rtol=2e-2)

    # TODO(synk): the module's backward-pass hook printing (register_hook) and
    # forward-pass print statements have no Pallas equivalent; only the forward
    # computation is implemented here.
    print("KERNEL_OK")
</pallas_src>

<mosaic_0001>
module attributes {stable_mosaic.version = 11 : i64} {
  func.func @mlp_skip_kernel(%arg0: i32, %arg1: memref<7xf32, #tpu.memory_space<smem>>, %arg2: memref<8x128xf32, #tpu.memory_space<vmem>>, %arg3: memref<8x128xf32, #tpu.memory_space<vmem>>) attributes {dimension_semantics = [#tpu.dimension_semantics<parallel>], iteration_bounds = array<i64: 1>, scalar_prefetch = 0 : i64, scratch_operands = 0 : i64, tpu.core_type = #tpu.core_type<tc>, window_params = [{transform_indices = @transform_0, window_bounds = array<i64: 7>}, {transform_indices = @transform_1, window_bounds = array<i64: 8, 128>}, {transform_indices = @transform_2, window_bounds = array<i64: 8, 128>}]} {
    %c0 = arith.constant 0 : index
    %0 = memref.load %arg1[%c0] : memref<7xf32, #tpu.memory_space<smem>>
    %c1 = arith.constant 1 : index
    %1 = memref.load %arg1[%c1] : memref<7xf32, #tpu.memory_space<smem>>
    %c2 = arith.constant 2 : index
    %2 = memref.load %arg1[%c2] : memref<7xf32, #tpu.memory_space<smem>>
    %c3 = arith.constant 3 : index
    %3 = memref.load %arg1[%c3] : memref<7xf32, #tpu.memory_space<smem>>
    %c4 = arith.constant 4 : index
    %4 = memref.load %arg1[%c4] : memref<7xf32, #tpu.memory_space<smem>>
    %c5 = arith.constant 5 : index
    %5 = memref.load %arg1[%c5] : memref<7xf32, #tpu.memory_space<smem>>
    %c6 = arith.constant 6 : index
    %6 = memref.load %arg1[%c6] : memref<7xf32, #tpu.memory_space<smem>>
    %c0_0 = arith.constant 0 : index
    %c0_1 = arith.constant 0 : index
    %7 = vector.load %arg2[%c0_0, %c0_1] : memref<8x128xf32, #tpu.memory_space<vmem>>, vector<8x128xf32>
    %8 = vector.broadcast %0 : f32 to vector<8x128xf32>
    %9 = arith.mulf %7, %8 : vector<8x128xf32>
    %10 = vector.broadcast %1 : f32 to vector<8x128xf32>
    %11 = arith.addf %9, %10 : vector<8x128xf32>
    %cst = arith.constant 0.000000e+00 : f32
    %12 = vector.broadcast %cst : f32 to vector<8x128xf32>
    %13 = arith.maximumf %11, %12 : vector<8x128xf32>
    %14 = vector.broadcast %2 : f32 to vector<8x128xf32>
    %15 = arith.mulf %13, %14 : vector<8x128xf32>
    %16 = vector.broadcast %3 : f32 to vector<8x128xf32>
    %17 = arith.addf %15, %16 : vector<8x128xf32>
    %cst_2 = arith.constant 0.000000e+00 : f32
    %18 = vector.broadcast %cst_2 : f32 to vector<8x128xf32>
    %19 = arith.maximumf %17, %18 : vector<8x128xf32>
    %20 = vector.broadcast %4 : f32 to vector<8x128xf32>
    %21 = arith.mulf %19, %20 : vector<8x128xf32>
    %22 = vector.broadcast %5 : f32 to vector<8x128xf32>
    %23 = arith.mulf %13, %22 : vector<8x128xf32>
    %24 = arith.addf %21, %23 : vector<8x128xf32>
    %25 = vector.broadcast %6 : f32 to vector<8x128xf32>
    %26 = arith.addf %24, %25 : vector<8x128xf32>
    %c0_3 = arith.constant 0 : index
    %c0_4 = arith.constant 0 : index
    %27 = vector.load %arg3[%c0_3, %c0_4] : memref<8x128xf32, #tpu.memory_space<vmem>>, vector<8x128xf32>
    tpu.vector_store %arg3[%c0_3, %c0_4], %26 {strides = array<i32>} : memref<8x128xf32, #tpu.memory_space<vmem>>, vector<8x128xf32>,
    return
  }
  func.func @transform_0(%arg0: i32) -> i32 {
    %c0_i32 = arith.constant 0 : i32
    %c0_i32_0 = arith.constant 0 : i32
    return %c0_i32 : i32
  }
  func.func @transform_1(%arg0: i32) -> (i32, i32) {
    %c0_i32 = arith.constant 0 : i32
    %c0_i32_0 = arith.constant 0 : i32
    return %arg0, %c0_i32 : i32, i32
  }
  func.func @transform_2(%arg0: i32) -> (i32, i32) {
    %c0_i32 = arith.constant 0 : i32
    %c0_i32_0 = arith.constant 0 : i32
    return %arg0, %c0_i32 : i32, i32
  }
}

</mosaic_0001>

<llo_original>
// kernel: tpu_custom_call.1
$region0: #{tpu_custom_call.1}
  #allocation0 [shape = 'u32[]', space=smem, size = 0x4, offset = 0x4, fixed_abs, tag = 'smem constant byte address 0x4 - core index']
  #allocation1 [shape = 'u32[72,128]{1,0:T(1,128)}', space=vmem, size = 0x9000, scoped, tag = 'internal scratch']
  %s0 = inlined_call_operand.hbm [shape: f32[7], index: 0, kind: input, shape index: {}]
  %s1 = inlined_call_operand.hbm [shape: f32[8,128], index: 1, kind: input, shape index: {}]
  %s2 = inlined_call_operand.hbm [shape: f32[8,128], index: 2, kind: output, shape index: {}]
  %s3 = sld [smem:[#allocation0]]
  $region26: #{tpu_custom_call.1} parent=0
    _
  %s5 = ssub.s32 1, %s3
  %s6 = scalar_select 0, %s5, %s3
  $region1: #{tpu_custom_call.1} parent=0
    #allocation2 [shape = 'u8[512]{0}', space=smem, size = 0x200, scoped, tag = 'input window, operand 0, single buffered']
    #allocation3 [shape = 's32[1]{0}', space=sflag, size = 0x4, scoped, tag = 'scoped memory for tpu_custom_call.1']
    #allocation4 [shape = 's32[1]{0}', space=sflag, size = 0x4, scoped, tag = 'scoped memory for tpu_custom_call.1']
    #allocation5 [shape = 's32[1]{0}', space=sflag, size = 0x4, scoped, tag = 'scoped memory for tpu_custom_call.1']
    #allocation6 [shape = 'u8[4096]{0}', space=vmem, size = 0x1000, scoped, tag = 'input window, operand 1, single buffered']
    #allocation7 [shape = 'u8[4096]{0}', space=vmem, size = 0x1000, scoped, tag = 'output window, operand 0, single buffered']
    %7 = vsyncpa [#allocation5], 0
    %8 = vsyncpa [#allocation3], 0
    %9 = vsyncpa [#allocation4], 0
    // Predicated region
    $region2: #{tpu_custom_call.1} parent=1 // pred_check
      _
    $region3: #{tpu_custom_call.1} parent=1 // pred_check_branch
      %11 = sbr.rel (0) target = $region5
    $region4: #{tpu_custom_call.1} parent=1 // pred_region
      %13 = vsyncadd [#allocation5], 0
      %s15 = sshll.u32 %s0, 4
      %s16 = int_to_ptr.hbm [resolvable:$true] %s15
      %18 = dma.hbm_to_smem %s16, 16, [#allocation2], [#allocation5]
    $region5: #{tpu_custom_call.1} parent=1 // pred_fallthru
      _
    // Predicated region
    $region6: #{tpu_custom_call.1} parent=1 // pred_check
      _
    $region7: #{tpu_custom_call.1} parent=1 // pred_check_branch
      %20 = sbr.rel (0) target = $region9
    $region8: #{tpu_custom_call.1} parent=1 // pred_region
      %22 = vsyncadd [#allocation3], 0
      %s24 = sshll.u32 %s1, 4
      %s25 = int_to_ptr.hbm [resolvable:$true] %s24
      %s26 = sshll.u32 [#allocation6], 4
      %s27 = int_to_ptr.vmem [resolvable:$true] %s26
      %29 = dma.hbm_to_vmem [thread:$0]  %s25, 128, %s27, [#allocation3]
    $region9: #{tpu_custom_call.1} parent=1 // pred_fallthru
      _
    // Predicated region
    $region10: #{tpu_custom_call.1} parent=1 // pred_check
      _
    $region11: #{tpu_custom_call.1} parent=1 // pred_check_branch
      %31 = sbr.rel (0) target = $region13
    $region12: #{tpu_custom_call.1} parent=1 // pred_region
      %33 = dma.done [#allocation5], 16
    $region13: #{tpu_custom_call.1} parent=1 // pred_fallthru
      _
    // Predicated region
    $region14: #{tpu_custom_call.1} parent=1 // pred_check
      _
    $region15: #{tpu_custom_call.1} parent=1 // pred_check_branch
      %35 = sbr.rel (0) target = $region17
    $region16: #{tpu_custom_call.1} parent=1 // pred_region
      %37 = dma.done [#allocation3], 128
    $region17: #{tpu_custom_call.1} parent=1 // pred_fallthru
      _
    %38 = sfence
    %s39 = sld [smem:[#allocation2]]
    %s40 = sld [smem:[#allocation2 + $0x1]]
    %s41 = sld [smem:[#allocation2 + $0x2]]
    %s42 = sld [smem:[#allocation2 + $0x3]]
    %s43 = sld [smem:[#allocation2 + $0x4]]
    %s44 = sld [smem:[#allocation2 + $0x5]]
    %s45 = sld [smem:[#allocation2 + $0x6]]
    %v46 = vld [vmem:[#allocation6] sm:$0xff]
    %v47 = vstv %s39
    %v48 = vmul.f32 %v46, %v47
    %v49 = vstv %s40
    %v50 = vadd.f32 %v48, %v49
    %v51 = vmax.f32 %v50, 0.0
    %v52 = vstv %s41
    %v53 = vmul.f32 %v51, %v52
    %v54 = vstv %s42
    %v55 = vadd.f32 %v53, %v54
    %v56 = vmax.f32 %v55, 0.0
    %v57 = vstv %s43
    %v58 = vmul.f32 %v56, %v57
    %v59 = vstv %s44
    %v60 = vmul.f32 %v51, %v59
    %v61 = vadd.f32 %v58, %v60
    %v62 = vstv %s45
    %v63 = vadd.f32 %v61, %v62
    %64 = vst [vmem:[#allocation7] sm:$0xff] %v63
    // Predicated region
    $region18: #{tpu_custom_call.1} parent=1 // pred_check
      _
    $region19: #{tpu_custom_call.1} parent=1 // pred_check_branch
      %66 = sbr.rel (0) target = $region21
    $region20: #{tpu_custom_call.1} parent=1 // pred_region
      %68 = vsyncadd [#allocation4], 0
      %s70 = sshll.u32 [#allocation7], 4
      %s71 = int_to_ptr.vmem [resolvable:$true] %s70
      %s72 = sshll.u32 %s2, 4
      %s73 = int_to_ptr.hbm [resolvable:$true] %s72
      %75 = dma.vmem_to_hbm [thread:$0]  %s71, 128, %s73, [#allocation4]
    $region21: #{tpu_custom_call.1} parent=1 // pred_fallthru
      _
    // Predicated region
    $region22: #{tpu_custom_call.1} parent=1 // pred_check
      _
    $region23: #{tpu_custom_call.1} parent=1 // pred_check_branch
      %77 = sbr.rel (0) target = $region25
    $region24: #{tpu_custom_call.1} parent=1 // pred_region
      %79 = dma.done [#allocation4], 128
    $region25: #{tpu_custom_call.1} parent=1 // pred_fallthru
      _
    %80 = vsyncpa [#allocation3], 1
    %81 = vsyncpa [#allocation4], 1
    %82 = vsyncpa [#allocation5], 1

</llo_original>
